<compile_context>
chip_gen: v7x
topology: tpu7x:2x2x1
jax: 0.10.0
libtpu: 0.0.40
codegen_flags: <defaults>
</compile_context>

<pallas_src>
import jax
import jax.numpy as jnp
from jax.experimental import pallas as pl
from jax.experimental.pallas import tpu as pltpu

_LANE = 128  # lane width (last-dim tiling)


def _round_up(n, m):
    return ((n + m - 1) // m) * m


def _sublane(dtype):
    # Second-to-last-dim tiling requirement per dtype width.
    return {4: 8, 2: 16, 1: 32}.get(jnp.dtype(dtype).itemsize, 8)


def _device_kind():
    try:
        return jax.devices()[0].device_kind.lower()
    except Exception:
        return ""


def _vmem_limit_bytes():
    kind = _device_kind()
    if "v7" in kind:                   # 64 MiB physical VMEM per TC
        return 48 * 1024 * 1024
    if "v5" in kind or "v6" in kind:   # 128 MiB physical VMEM
        return 100 * 1024 * 1024
    return 64 * 1024 * 1024            # unknown generation: stay conservative


# --------------------------------------------------------------------------- kernels
def _mlp_kernel_resident(x_ref, w1_ref, b1_ref, w2_ref, b2_ref, o_ref):
    # Whole MLP in one grid step: both matmuls + bias + ReLU, f32 accumulation.
    h = jnp.dot(x_ref[...], w1_ref[...], preferred_element_type=jnp.float32)
    h = jnp.maximum(h + b1_ref[...], 0.0)                       # bias + ReLU in f32
    y = jnp.dot(h.astype(w2_ref.dtype), w2_ref[...],
                preferred_element_type=jnp.float32)
    o_ref[...] = (y + b2_ref[...]).astype(o_ref.dtype)


def _mlp_kernel_ktiled(x_ref, w1_ref, b1_ref, w2_ref, b2_ref, o_ref, acc_ref):
    # Hidden-dim (reduction) grid axis is axis 1; accumulate partial y in f32 scratch.
    k = pl.program_id(1)

    @pl.when(k == 0)
    def _():
        acc_ref[...] = jnp.zeros_like(acc_ref)

    h = jnp.dot(x_ref[...], w1_ref[...], preferred_element_type=jnp.float32)
    h = jnp.maximum(h + b1_ref[...], 0.0)
    acc_ref[...] += jnp.dot(h.astype(w2_ref.dtype), w2_ref[...],
                            preferred_element_type=jnp.float32)

    @pl.when(k == pl.num_programs(1) - 1)
    def _():
        o_ref[...] = (acc_ref[...] + b2_ref[...]).astype(o_ref.dtype)


# --------------------------------------------------------------------------- wrapper
def _pad2d(a, rows, cols, dtype):
    """Cast + zero-pad a 2-D array; no-op (no HBM copy) when already aligned."""
    if a.dtype != dtype:
        a = a.astype(dtype)
    if a.shape == (rows, cols):
        return a
    return jnp.zeros((rows, cols), dtype).at[:a.shape[0], :a.shape[1]].set(a)


def mlp_forward(x, w1, b1, w2, b2, *, batch_tile=256, hidden_tile=512,
                compute_dtype=None, force_hidden_tiling=False):
    """Fused MLP forward: y = relu(x @ w1 + b1) @ w2 + b2.

    x : (B, in)   w1 : (in, hidden)   b1 : (hidden,)
    w2 : (hidden, out)   b2 : (out,)
    """
    B, in_size = x.shape
    in_w, hidden = w1.shape
    hidden_w, out_size = w2.shape
    assert in_w == in_size and hidden_w == hidden

    out_dtype = x.dtype
    x_dt = x.dtype if compute_dtype is None else jnp.dtype(compute_dtype)
    w_dt = w1.dtype if compute_dtype is None else jnp.dtype(compute_dtype)
    x_items = jnp.dtype(x_dt).itemsize
    w_items = jnp.dtype(w_dt).itemsize
    o_items = jnp.dtype(out_dtype).itemsize

    # ---- hardware-tiled (padded) feature sizes: lane-dense everywhere -------------
    in_p = _round_up(in_size, _LANE)
    hid_p = _round_up(hidden, _LANE)
    out_p = _round_up(out_size, _LANE)

    # ---- batch tile: dtype-aware sublane rounding, adaptive for small/ragged B ----
    sub = max(_sublane(x_dt), _sublane(out_dtype))
    tb = _round_up(min(batch_tile, _round_up(B, sub)), sub)
    # Shrink tile while the padded tail would be >25% redundant two-matmul work.
    while tb > sub and (_round_up(B, tb) - B) * 4 > _round_up(B, tb):
        tb = _round_up(tb // 2, sub)
    # v7x has 2 TensorCores: make sure the "parallel" batch axis has >= 2 steps.
    if "v7" in _device_kind() and _round_up(B, tb) // tb < 2 and tb >= 2 * sub:
        tb = _round_up(tb // 2, sub)
    B_p = _round_up(B, tb)
    nb = B_p // tb

    vmem_limit = _vmem_limit_bytes()

    # ---- path selection: resident weights vs hidden-dim reduction grid ------------
    resident_bytes = (w_items * (in_p * hid_p + hid_p * out_p)     # weights (x1, Buffered(1))
                      + 4 * (hid_p + out_p)                        # f32 biases
                      + 2 * x_items * tb * in_p                    # x tile, double buffered
                      + 2 * o_items * tb * out_p)                  # out tile, double buffered
    use_ktiled = force_hidden_tiling or resident_bytes > int(0.7 * vmem_limit)

    # ---- pad operands (skipped when already aligned) -------------------------------
    x_p = _pad2d(x, B_p, in_p, x_dt)
    w1_p = _pad2d(w1, in_p, hid_p, w_dt)
    w2_p = _pad2d(w2, hid_p, out_p, w_dt)
    b1_p = _pad2d(b1.reshape(1, -1), 1, hid_p, jnp.float32)
    b2_p = _pad2d(b2.reshape(1, -1), 1, out_p, jnp.float32)

    # Advisory cost hint (per-operand dtypes; weights re-read per batch tile if tiled).
    weight_passes = nb if use_ktiled else 1
    flops = 2 * B_p * (in_p * hid_p + hid_p * out_p)
    bytes_accessed = (x_items * B_p * in_p
                      + weight_passes * (w_items * (in_p * hid_p + hid_p * out_p)
                                         + 4 * (hid_p + out_p))
                      + o_items * B_p * out_p)
    cost = pl.CostEstimate(flops=flops, transcendentals=0, bytes_accessed=bytes_accessed)
    out_shape = jax.ShapeDtypeStruct((B_p, out_p), out_dtype)

    if not use_ktiled:
        def call(single_buffer_weights):
            # Constant-index weights never change block -> one VMEM buffer is enough.
            kw = dict(pipeline_mode=pl.Buffered(1)) if single_buffer_weights else {}
            return pl.pallas_call(
                _mlp_kernel_resident,
                out_shape=out_shape,
                grid=(nb,),
                in_specs=[
                    pl.BlockSpec((tb, in_p), lambda i: (i, 0)),
                    pl.BlockSpec((in_p, hid_p), lambda i: (0, 0), **kw),
                    pl.BlockSpec((1, hid_p), lambda i: (0, 0), **kw),
                    pl.BlockSpec((hid_p, out_p), lambda i: (0, 0), **kw),
                    pl.BlockSpec((1, out_p), lambda i: (0, 0), **kw),
                ],
                out_specs=pl.BlockSpec((tb, out_p), lambda i: (i, 0)),
                compiler_params=pltpu.CompilerParams(
                    dimension_semantics=("parallel",),
                    vmem_limit_bytes=vmem_limit),
                cost_estimate=cost,
            )(x_p, w1_p, b1_p, w2_p, b2_p)

        try:
            out_padded = call(single_buffer_weights=True)
        except Exception:
            # Installed jax rejects Buffered(1) on pallas_call specs: fall back to
            # default double buffering (correct, just more VMEM).
            out_padded = call(single_buffer_weights=False)
    else:
        # Hidden-dim reduction path: w1 (in, th), w2 (th, out), f32 accumulator.
        th = min(_round_up(min(hidden_tile, hid_p), _LANE), hid_p)

        def _ktiled_bytes(th_):
            return (2 * x_items * tb * in_p
                    + 2 * w_items * (in_p * th_ + th_ * out_p)
                    + 2 * 4 * (th_ + out_p)
                    + 2 * o_items * tb * out_p
                    + 4 * tb * out_p)

        while th > _LANE and _ktiled_bytes(th) > int(0.8 * vmem_limit):
            th = _round_up(th // 2, _LANE)
        # TODO(synk): if in_p or out_p alone exceed the VMEM budget, also tile the
        # input / output feature dims (not needed for typical MLP heads).

        nk = pl.cdiv(hid_p, th)
        hid_pp = nk * th
        if hid_pp != hid_p:  # make the hidden dim an exact multiple of th
            w1_p = _pad2d(w1_p, in_p, hid_pp, w_dt)
            w2_p = _pad2d(w2_p, hid_pp, out_p, w_dt)
            b1_p = _pad2d(b1_p, 1, hid_pp, jnp.float32)

        out_padded = pl.pallas_call(
            _mlp_kernel_ktiled,
            out_shape=out_shape,
            grid=(nb, nk),                         # reduction axis last
            in_specs=[
                pl.BlockSpec((tb, in_p), lambda i, k: (i, 0)),
                pl.BlockSpec((in_p, th), lambda i, k: (0, k)),
                pl.BlockSpec((1, th), lambda i, k: (0, k)),
                pl.BlockSpec((th, out_p), lambda i, k: (k, 0)),
                pl.BlockSpec((1, out_p), lambda i, k: (0, 0)),
            ],
            out_specs=pl.BlockSpec((tb, out_p), lambda i, k: (i, 0)),
            scratch_shapes=[pltpu.VMEM((tb, out_p), jnp.float32)],
            compiler_params=pltpu.CompilerParams(
                dimension_semantics=("parallel", "arbitrary"),
                vmem_limit_bytes=vmem_limit),
            cost_estimate=cost,
        )(x_p, w1_p, b1_p, w2_p, b2_p)

    if B_p == B and out_p == out_size:
        return out_padded
    return out_padded[:B, :out_size]


# --------------------------------------------------------------------------- harness
def init_mlp_params(key, input_size, hidden_size, output_size, dtype=jnp.float32):
    """PyTorch nn.Linear stores weight as (out, in); transpose to (in, out)."""
    k1, k2, k3, k4 = jax.random.split(key, 4)
    w1_pt = jax.random.normal(k1, (hidden_size, input_size), dtype) * 0.1
    b1 = jax.random.normal(k2, (hidden_size,), dtype) * 0.1
    w2_pt = jax.random.normal(k3, (output_size, hidden_size), dtype) * 0.1
    b2 = jax.random.normal(k4, (output_size,), dtype) * 0.1
    return w1_pt.T, b1, w2_pt.T, b2


def _ref_mlp(x, w1, b1, w2, b2):
    return jnp.maximum(x @ w1 + b1[None, :], 0.0) @ w2 + b2[None, :]


if __name__ == "__main__":
    key = jax.random.PRNGKey(0)

    # 1) Module-consistent small shapes -> resident-weight fast path.
    batch, input_size, hidden_size, output_size = 2, 16, 32, 8
    kx, kp = jax.random.split(key)
    x = jax.random.normal(kx, (batch, input_size), jnp.float32)
    params = init_mlp_params(kp, input_size, hidden_size, output_size)
    out = jax.block_until_ready(mlp_forward(x, *params))
    ref = _ref_mlp(x, *params)
    assert out.shape == (batch, output_size)
    assert jnp.allclose(out, ref, atol=1e-5, rtol=1e-5)

    # 2) Exercise the hidden-tiled reduction path and a ragged batch.
    batch2, in2, hid2, out2 = 20, 48, 384, 24
    kx2, kp2 = jax.random.split(kp)
    x2 = jax.random.normal(kx2, (batch2, in2), jnp.float32)
    params2 = init_mlp_params(kp2, in2, hid2, out2)
    out_t = jax.block_until_ready(
        mlp_forward(x2, *params2, hidden_tile=128, force_hidden_tiling=True))
    ref_t = _ref_mlp(x2, *params2)
    assert out_t.shape == (batch2, out2)
    assert jnp.allclose(out_t, ref_t, atol=1e-4, rtol=1e-4)

    print("KERNEL_OK")
</pallas_src>

<mosaic_0001>
module attributes {stable_mosaic.version = 11 : i64} {
  func.func @_mlp_kernel_resident(%arg0: i32, %arg1: memref<8x128xf32, #tpu.memory_space<vmem>>, %arg2: memref<128x128xf32, #tpu.memory_space<vmem>>, %arg3: memref<1x128xf32, #tpu.memory_space<vmem>>, %arg4: memref<128x128xf32, #tpu.memory_space<vmem>>, %arg5: memref<1x128xf32, #tpu.memory_space<vmem>>, %arg6: memref<8x128xf32, #tpu.memory_space<vmem>>) attributes {dimension_semantics = [#tpu.dimension_semantics<parallel>], iteration_bounds = array<i64: 1>, scalar_prefetch = 0 : i64, scratch_operands = 0 : i64, tpu.core_type = #tpu.core_type<tc>, window_params = [{transform_indices = @transform_0, window_bounds = array<i64: 8, 128>}, {pipeline_mode = #tpu.pipeline_mode<synchronous>, transform_indices = @transform_1, window_bounds = array<i64: 128, 128>}, {pipeline_mode = #tpu.pipeline_mode<synchronous>, transform_indices = @transform_2, window_bounds = array<i64: 1, 128>}, {pipeline_mode = #tpu.pipeline_mode<synchronous>, transform_indices = @transform_3, window_bounds = array<i64: 128, 128>}, {pipeline_mode = #tpu.pipeline_mode<synchronous>, transform_indices = @transform_4, window_bounds = array<i64: 1, 128>}, {transform_indices = @transform_5, window_bounds = array<i64: 8, 128>}]} {
    %c0 = arith.constant 0 : index
    %c0_0 = arith.constant 0 : index
    %0 = vector.load %arg1[%c0, %c0_0] : memref<8x128xf32, #tpu.memory_space<vmem>>, vector<8x128xf32>
    %c0_1 = arith.constant 0 : index
    %c0_2 = arith.constant 0 : index
    %1 = vector.load %arg2[%c0_1, %c0_2] : memref<128x128xf32, #tpu.memory_space<vmem>>, vector<128x128xf32>
    %cst = arith.constant dense<0.000000e+00> : vector<8x128xf32>
    %2 = tpu.matmul %0, %1, %cst {dimension_numbers = #tpu.dot_dimension_numbers<[1], [0], [0], [1], [0, 0, 1, 1], [], []>} : vector<8x128xf32>, vector<128x128xf32>, vector<8x128xf32> -> vector<8x128xf32>
    %c0_3 = arith.constant 0 : index
    %c0_4 = arith.constant 0 : index
    %3 = vector.load %arg3[%c0_3, %c0_4] : memref<1x128xf32, #tpu.memory_space<vmem>>, vector<1x128xf32>
    %4 = vector.broadcast %3 : vector<1x128xf32> to vector<8x128xf32>
    %5 = arith.addf %2, %4 : vector<8x128xf32>
    %cst_5 = arith.constant 0.000000e+00 : f32
    %6 = vector.broadcast %cst_5 : f32 to vector<8x128xf32>
    %7 = arith.maximumf %5, %6 : vector<8x128xf32>
    %c0_6 = arith.constant 0 : index
    %c0_7 = arith.constant 0 : index
    %8 = vector.load %arg4[%c0_6, %c0_7] : memref<128x128xf32, #tpu.memory_space<vmem>>, vector<128x128xf32>
    %cst_8 = arith.constant dense<0.000000e+00> : vector<8x128xf32>
    %9 = tpu.matmul %7, %8, %cst_8 {dimension_numbers = #tpu.dot_dimension_numbers<[1], [0], [0], [1], [0, 0, 1, 1], [], []>} : vector<8x128xf32>, vector<128x128xf32>, vector<8x128xf32> -> vector<8x128xf32>
    %c0_9 = arith.constant 0 : index
    %c0_10 = arith.constant 0 : index
    %10 = vector.load %arg5[%c0_9, %c0_10] : memref<1x128xf32, #tpu.memory_space<vmem>>, vector<1x128xf32>
    %11 = vector.broadcast %10 : vector<1x128xf32> to vector<8x128xf32>
    %12 = arith.addf %9, %11 : vector<8x128xf32>
    %c0_11 = arith.constant 0 : index
    %c0_12 = arith.constant 0 : index
    %13 = vector.load %arg6[%c0_11, %c0_12] : memref<8x128xf32, #tpu.memory_space<vmem>>, vector<8x128xf32>
    tpu.vector_store %arg6[%c0_11, %c0_12], %12 {strides = array<i32>} : memref<8x128xf32, #tpu.memory_space<vmem>>, vector<8x128xf32>,
    return
  }
  func.func @transform_0(%arg0: i32) -> (i32, i32) {
    %c0_i32 = arith.constant 0 : i32
    %c0_i32_0 = arith.constant 0 : i32
    return %arg0, %c0_i32 : i32, i32
  }
  func.func @transform_1(%arg0: i32) -> (i32, i32) {
    %c0_i32 = arith.constant 0 : i32
    %c0_i32_0 = arith.constant 0 : i32
    %c0_i32_1 = arith.constant 0 : i32
    return %c0_i32, %c0_i32_0 : i32, i32
  }
  func.func @transform_2(%arg0: i32) -> (i32, i32) {
    %c0_i32 = arith.constant 0 : i32
    %c0_i32_0 = arith.constant 0 : i32
    %c0_i32_1 = arith.constant 0 : i32
    return %c0_i32, %c0_i32_0 : i32, i32
  }
  func.func @transform_3(%arg0: i32) -> (i32, i32) {
    %c0_i32 = arith.constant 0 : i32
    %c0_i32_0 = arith.constant 0 : i32
    %c0_i32_1 = arith.constant 0 : i32
    return %c0_i32, %c0_i32_0 : i32, i32
  }
  func.func @transform_4(%arg0: i32) -> (i32, i32) {
    %c0_i32 = arith.constant 0 : i32
    %c0_i32_0 = arith.constant 0 : i32
    %c0_i32_1 = arith.constant 0 : i32
    return %c0_i32, %c0_i32_0 : i32, i32
  }
  func.func @transform_5(%arg0: i32) -> (i32, i32) {
    %c0_i32 = arith.constant 0 : i32
    %c0_i32_0 = arith.constant 0 : i32
    return %arg0, %c0_i32 : i32, i32
  }
}

module attributes {stable_mosaic.version = 11 : i64} {
  func.func @_mlp_kernel_resident(%arg0: i32, %arg1: memref<8x128xf32, #tpu.memory_space<vmem>>, %arg2: memref<128x128xf32, #tpu.memory_space<vmem>>, %arg3: memref<1x128xf32, #tpu.memory_space<vmem>>, %arg4: memref<128x128xf32, #tpu.memory_space<vmem>>, %arg5: memref<1x128xf32, #tpu.memory_space<vmem>>, %arg6: memref<8x128xf32, #tpu.memory_space<vmem>>) attributes {dimension_semantics = [#tpu.dimension_semantics<parallel>], iteration_bounds = array<i64: 1>, scalar_prefetch = 0 : i64, scratch_operands = 0 : i64, tpu.core_type = #tpu.core_type<tc>, window_params = [{transform_indices = @transform_0, window_bounds = array<i64: 8, 128>}, {pipeline_mode = #tpu.pipeline_mode<synchronous>, transform_indices = @transform_1, window_bounds = array<i64: 128, 128>}, {pipeline_mode = #tpu.pipeline_mode<synchronous>, transform_indices = @transform_2, window_bounds = array<i64: 1, 128>}, {pipeline_mode = #tpu.pipeline_mode<synchronous>, transform_indices = @transform_3, window_bounds = array<i64: 128, 128>}, {pipeline_mode = #tpu.pipeline_mode<synchronous>, transform_indices = @transform_4, window_bounds = array<i64: 1, 128>}, {transform_indices = @transform_5, window_bounds = array<i64: 8, 128>}]} {
    %c0 = arith.constant 0 : index
    %c0_0 = arith.constant 0 : index
    %0 = vector.load %arg1[%c0, %c0_0] : memref<8x128xf32, #tpu.memory_space<vmem>>, vector<8x128xf32>
    %c0_1 = arith.constant 0 : index
    %c0_2 = arith.constant 0 : index
    %1 = vector.load %arg2[%c0_1, %c0_2] : memref<128x128xf32, #tpu.memory_space<vmem>>, vector<128x128xf32>
    %cst = arith.constant dense<0.000000e+00> : vector<8x128xf32>
    %2 = tpu.matmul %0, %1, %cst {dimension_numbers = #tpu.dot_dimension_numbers<[1], [0], [0], [1], [0, 0, 1, 1], [], []>} : vector<8x128xf32>, vector<128x128xf32>, vector<8x128xf32> -> vector<8x128xf32>
    %c0_3 = arith.constant 0 : index
    %c0_4 = arith.constant 0 : index
    %3 = vector.load %arg3[%c0_3, %c0_4] : memref<1x128xf32, #tpu.memory_space<vmem>>, vector<1x128xf32>
    %4 = vector.broadcast %3 : vector<1x128xf32> to vector<8x128xf32>
    %5 = arith.addf %2, %4 : vector<8x128xf32>
    %cst_5 = arith.constant 0.000000e+00 : f32
    %6 = vector.broadcast %cst_5 : f32 to vector<8x128xf32>
    %7 = arith.maximumf %5, %6 : vector<8x128xf32>
    %c0_6 = arith.constant 0 : index
    %c0_7 = arith.constant 0 : index
    %8 = vector.load %arg4[%c0_6, %c0_7] : memref<128x128xf32, #tpu.memory_space<vmem>>, vector<128x128xf32>
    %cst_8 = arith.constant dense<0.000000e+00> : vector<8x128xf32>
    %9 = tpu.matmul %7, %8, %cst_8 {dimension_numbers = #tpu.dot_dimension_numbers<[1], [0], [0], [1], [0, 0, 1, 1], [], []>} : vector<8x128xf32>, vector<128x128xf32>, vector<8x128xf32> -> vector<8x128xf32>
    %c0_9 = arith.constant 0 : index
    %c0_10 = arith.constant 0 : index
    %10 = vector.load %arg5[%c0_9, %c0_10] : memref<1x128xf32, #tpu.memory_space<vmem>>, vector<1x128xf32>
    %11 = vector.broadcast %10 : vector<1x128xf32> to vector<8x128xf32>
    %12 = arith.addf %9, %11 : vector<8x128xf32>
    %c0_11 = arith.constant 0 : index
    %c0_12 = arith.constant 0 : index
    %13 = vector.load %arg6[%c0_11, %c0_12] : memref<8x128xf32, #tpu.memory_space<vmem>>, vector<8x128xf32>
    tpu.vector_store %arg6[%c0_11, %c0_12], %12 {strides = array<i32>} : memref<8x128xf32, #tpu.memory_space<vmem>>, vector<8x128xf32>,
    return
  }
  func.func @transform_0(%arg0: i32) -> (i32, i32) {
    %c0_i32 = arith.constant 0 : i32
    %c0_i32_0 = arith.constant 0 : i32
    return %arg0, %c0_i32 : i32, i32
  }
  func.func @transform_1(%arg0: i32) -> (i32, i32) {
    %c0_i32 = arith.constant 0 : i32
    %c0_i32_0 = arith.constant 0 : i32
    %c0_i32_1 = arith.constant 0 : i32
    return %c0_i32, %c0_i32_0 : i32, i32
  }
  func.func @transform_2(%arg0: i32) -> (i32, i32) {
    %c0_i32 = arith.constant 0 : i32
    %c0_i32_0 = arith.constant 0 : i32
    %c0_i32_1 = arith.constant 0 : i32
    return %c0_i32, %c0_i32_0 : i32, i32
  }
  func.func @transform_3(%arg0: i32) -> (i32, i32) {
    %c0_i32 = arith.constant 0 : i32
    %c0_i32_0 = arith.constant 0 : i32
    %c0_i32_1 = arith.constant 0 : i32
    return %c0_i32, %c0_i32_0 : i32, i32
  }
  func.func @transform_4(%arg0: i32) -> (i32, i32) {
    %c0_i32 = arith.constant 0 : i32
    %c0_i32_0 = arith.constant 0 : i32
    %c0_i32_1 = arith.constant 0 : i32
    return %c0_i32, %c0_i32_0 : i32, i32
  }
  func.func @transform_5(%arg0: i32) -> (i32, i32) {
    %c0_i32 = arith.constant 0 : i32
    %c0_i32_0 = arith.constant 0 : i32
    return %arg0, %c0_i32 : i32, i32
  }
}

</mosaic_0001>

<llo_original>
// kernel: tpu_custom_call.1
$region0: #{tpu_custom_call.1}
  #allocation0 [shape = 'u32[]', space=smem, size = 0x4, offset = 0x4, fixed_abs, tag = 'smem constant byte address 0x4 - core index']
  #allocation1 [shape = 'u32[144,128]{1,0:T(1,128)}', space=vmem, size = 0x12000, scoped, tag = 'internal scratch']
  %s0 = inlined_call_operand.hbm [shape: f32[8,128], index: 0, kind: input, shape index: {}]
  %s1 = inlined_call_operand.hbm [shape: f32[128,128], index: 1, kind: input, shape index: {}]
  %s2 = inlined_call_operand.hbm [shape: f32[1,128], index: 2, kind: input, shape index: {}]
  %s3 = inlined_call_operand.hbm [shape: f32[128,128], index: 3, kind: input, shape index: {}]
  %s4 = inlined_call_operand.hbm [shape: f32[1,128], index: 4, kind: input, shape index: {}]
  %s5 = inlined_call_operand.hbm [shape: f32[8,128], index: 5, kind: output, shape index: {}]
  %s6 = sld [smem:[#allocation0]]
  $region50: #{tpu_custom_call.1} parent=0
    _
  %s8 = ssub.s32 1, %s6
  %s9 = scalar_select 0, %s8, %s6
  $region1: #{tpu_custom_call.1} parent=0
    #allocation2 [shape = 'u8[4096]{0}', space=vmem, size = 0x1000, scoped, tag = 'input window, operand 0, single buffered']
    #allocation3 [shape = 's32[1]{0}', space=sflag, size = 0x4, scoped, tag = 'scoped memory for tpu_custom_call.1']
    #allocation4 [shape = 's32[1]{0}', space=sflag, size = 0x4, scoped, tag = 'scoped memory for tpu_custom_call.1']
    #allocation5 [shape = 'u8[65536]{0}', space=vmem, size = 0x10000, scoped, tag = 'input window, operand 1, single buffered']
    #allocation6 [shape = 's32[1]{0}', space=sflag, size = 0x4, scoped, tag = 'scoped memory for tpu_custom_call.1']
    #allocation7 [shape = 'u8[512]{0}', space=vmem, size = 0x400, scoped, tag = 'input window, operand 2, single buffered']
    #allocation8 [shape = 'u8[65536]{0}', space=vmem, size = 0x10000, scoped, tag = 'input window, operand 3, single buffered']
    #allocation9 [shape = 's32[1]{0}', space=sflag, size = 0x4, scoped, tag = 'scoped memory for tpu_custom_call.1']
    #allocation10 [shape = 'u8[512]{0}', space=vmem, size = 0x400, scoped, tag = 'input window, operand 4, single buffered']
    #allocation11 [shape = 'u8[4096]{0}', space=vmem, size = 0x1000, scoped, tag = 'output window, operand 0, single buffered']
    %10 = vsyncpa [#allocation3], 0
    %11 = vsyncpa [#allocation6], 0
    %12 = vsyncpa [#allocation9], 0
    %13 = vsyncpa [#allocation4], 0
    // Predicated region
    $region2: #{tpu_custom_call.1} parent=1 // pred_check
      _
    $region3: #{tpu_custom_call.1} parent=1 // pred_check_branch
      %15 = sbr.rel (0) target = $region5
    $region4: #{tpu_custom_call.1} parent=1 // pred_region
      %s17 = ssub.s32 128, 128
      %18 = vsyncadd [#allocation3], %s17
      %s20 = sshll.u32 [#allocation2], 4
      %s21 = int_to_ptr.vmem [resolvable:$true] %s20
      %23 = dma.hbm_to_vmem [thread:$0]  %s0, 128, %s21, [#allocation3]
    $region5: #{tpu_custom_call.1} parent=1 // pred_fallthru
      _
    // Predicated region
    $region6: #{tpu_custom_call.1} parent=1 // pred_check
      _
    $region7: #{tpu_custom_call.1} parent=1 // pred_check_branch
      %25 = sbr.rel (0) target = $region9
    $region8: #{tpu_custom_call.1} parent=1 // pred_region
      %s27 = ssub.s32 2048, 2048
      %28 = vsyncadd [#allocation6], %s27
      %s29 = sshll.u32 [#allocation5], 4
      %s30 = int_to_ptr.vmem [resolvable:$true] %s29
      %35 = dma.hbm_to_vmem [thread:$0]  %s1, 2048, %s30, [#allocation6], 128, 128, 8
    $region9: #{tpu_custom_call.1} parent=1 // pred_fallthru
      _
    // Predicated region
    $region10: #{tpu_custom_call.1} parent=1 // pred_check
      _
    $region11: #{tpu_custom_call.1} parent=1 // pred_check_branch
      %37 = sbr.rel (0) target = $region13
    $region12: #{tpu_custom_call.1} parent=1 // pred_region
      %s39 = ssub.s32 16, 16
      %40 = vsyncadd [#allocation6], %s39
      %s42 = sshll.u32 [#allocation7], 4
      %s43 = int_to_ptr.vmem [resolvable:$true] %s42
      %45 = dma.hbm_to_vmem [thread:$0]  %s2, 16, %s43, [#allocation6]
    $region13: #{tpu_custom_call.1} parent=1 // pred_fallthru
      _
    // Predicated region
    $region14: #{tpu_custom_call.1} parent=1 // pred_check
      _
    $region15: #{tpu_custom_call.1} parent=1 // pred_check_branch
      %47 = sbr.rel (0) target = $region17
    $region16: #{tpu_custom_call.1} parent=1 // pred_region
      %s49 = ssub.s32 2048, 2048
      %50 = vsyncadd [#allocation9], %s49
      %s51 = sshll.u32 [#allocation8], 4
      %s52 = int_to_ptr.vmem [resolvable:$true] %s51
      %57 = dma.hbm_to_vmem [thread:$0]  %s3, 2048, %s52, [#allocation9], 128, 128, 8
    $region17: #{tpu_custom_call.1} parent=1 // pred_fallthru
      _
    // Predicated region
    $region18: #{tpu_custom_call.1} parent=1 // pred_check
      _
    $region19: #{tpu_custom_call.1} parent=1 // pred_check_branch
      %59 = sbr.rel (0) target = $region21
    $region20: #{tpu_custom_call.1} parent=1 // pred_region
      %s61 = ssub.s32 16, 16
      %62 = vsyncadd [#allocation9], %s61
      %s64 = sshll.u32 [#allocation10], 4
      %s65 = int_to_ptr.vmem [resolvable:$true] %s64
      %67 = dma.hbm_to_vmem [thread:$0]  %s4, 16, %s65, [#allocation9]
    $region21: #{tpu_custom_call.1} parent=1 // pred_fallthru
      _
    // Predicated region
    $region22: #{tpu_custom_call.1} parent=1 // pred_check
      _
    $region23: #{tpu_custom_call.1} parent=1 // pred_check_branch
      %69 = sbr.rel (0) target = $region25
    $region24: #{tpu_custom_call.1} parent=1 // pred_region
      %70 = dma.done [#allocation3], 128
    $region25: #{tpu_custom_call.1} parent=1 // pred_fallthru
      _
    // Predicated region
    $region26: #{tpu_custom_call.1} parent=1 // pred_check
      _
    $region27: #{tpu_custom_call.1} parent=1 // pred_check_branch
      %72 = sbr.rel (0) target = $region29
    $region28: #{tpu_custom_call.1} parent=1 // pred_region
      %73 = dma.done [#allocation6], 2048
    $region29: #{tpu_custom_call.1} parent=1 // pred_fallthru
      _
    // Predicated region
    $region30: #{tpu_custom_call.1} parent=1 // pred_check
      _
    $region31: #{tpu_custom_call.1} parent=1 // pred_check_branch
      %75 = sbr.rel (0) target = $region33
    $region32: #{tpu_custom_call.1} parent=1 // pred_region
      %76 = dma.done [#allocation6], 16
    $region33: #{tpu_custom_call.1} parent=1 // pred_fallthru
      _
    // Predicated region
    $region34: #{tpu_custom_call.1} parent=1 // pred_check
      _
    $region35: #{tpu_custom_call.1} parent=1 // pred_check_branch
      %78 = sbr.rel (0) target = $region37
    $region36: #{tpu_custom_call.1} parent=1 // pred_region
      %79 = dma.done [#allocation9], 2048
    $region37: #{tpu_custom_call.1} parent=1 // pred_fallthru
      _
    // Predicated region
    $region38: #{tpu_custom_call.1} parent=1 // pred_check
      _
    $region39: #{tpu_custom_call.1} parent=1 // pred_check_branch
      %81 = sbr.rel (0) target = $region41
    $region40: #{tpu_custom_call.1} parent=1 // pred_region
      %82 = dma.done [#allocation9], 16
    $region41: #{tpu_custom_call.1} parent=1 // pred_fallthru
      _
    %v83 = vld [vmem:[#allocation2] sm:$0xff]
    %v84 = vld [vmem:[#allocation5] sm:$0xff]
    %v85 = vld [vmem:[#allocation5 + $0x8] sm:$0xff]
    %v86 = vld [vmem:[#allocation5 + $0x10] sm:$0xff]
    %v87 = vld [vmem:[#allocation5 + $0x18] sm:$0xff]
    %v88 = vld [vmem:[#allocation5 + $0x20] sm:$0xff]
    %v89 = vld [vmem:[#allocation5 + $0x28] sm:$0xff]
    %v90 = vld [vmem:[#allocation5 + $0x30] sm:$0xff]
    %v91 = vld [vmem:[#allocation5 + $0x38] sm:$0xff]
    %v92 = vld [vmem:[#allocation5 + $0x40] sm:$0xff]
    %v93 = vld [vmem:[#allocation5 + $0x48] sm:$0xff]
    %v94 = vld [vmem:[#allocation5 + $0x50] sm:$0xff]
    %v95 = vld [vmem:[#allocation5 + $0x58] sm:$0xff]
    %v96 = vld [vmem:[#allocation5 + $0x60] sm:$0xff]
    %v97 = vld [vmem:[#allocation5 + $0x68] sm:$0xff]
    %v98 = vld [vmem:[#allocation5 + $0x70] sm:$0xff]
    %v99 = vld [vmem:[#allocation5 + $0x78] sm:$0xff]
    %v100 = vld [vmem:[#allocation7] sm:$0x1]
    %v102 = vlaneseq
    %v103 = vshrl.u32 %v102, 7
    %v104 = vsub.s32 0, %v103
    %v105 = vrot.slane %v100, %v104
    %107 = vmatprep.subr.mxu0 0.0
    %108 = vmatpush1.msra.mxu0 %v84
    %109 = vmatprep.subr.mxu0 0.0
    %110 = vmatpush1.msra.mxu0 %v85
    %111 = vmatprep.subr.mxu0 0.0
    %112 = vmatpush1.msra.mxu0 %v86
    %113 = vmatprep.subr.mxu0 0.0
    %114 = vmatpush1.msra.mxu0 %v87
    %115 = vmatprep.subr.mxu0 0.0
    %116 = vmatpush1.msra.mxu0 %v88
    %117 = vmatprep.subr.mxu0 0.0
    %118 = vmatpush1.msra.mxu0 %v89
    %119 = vmatprep.subr.mxu0 0.0
    %120 = vmatpush1.msra.mxu0 %v90
    %121 = vmatprep.subr.mxu0 0.0
    %122 = vmatpush1.msra.mxu0 %v91
    %123 = vmatprep.subr.mxu0 0.0
    %124 = vmatpush1.msra.mxu0 %v92
    %125 = vmatprep.subr.mxu0 0.0
    %126 = vmatpush1.msra.mxu0 %v93
    %127 = vmatprep.subr.mxu0 0.0
    %128 = vmatpush1.msra.mxu0 %v94
    %129 = vmatprep.subr.mxu0 0.0
    %130 = vmatpush1.msra.mxu0 %v95
    %131 = vmatprep.subr.mxu0 0.0
    %132 = vmatpush1.msra.mxu0 %v96
    %133 = vmatprep.subr.mxu0 0.0
    %134 = vmatpush1.msra.mxu0 %v97
    %135 = vmatprep.subr.mxu0 0.0
    %136 = vmatpush1.msra.mxu0 %v98
    %137 = vmatprep.subr.mxu0 0.0
    %138 = vmatpush1.msra.mxu0 %v99
    %139 = vmatprep.subr.mxu0 0.0
    %140 = vmatpush1.msra.mxu0 0.0
    %141 = vmatprep.subr.mxu0 0.0
    %142 = vmatpush1.msra.mxu0 0.0
    %143 = vmatprep.subr.mxu0 0.0
    %144 = vmatpush1.msra.mxu0 0.0
    %145 = vmatprep.subr.mxu0 0.0
    %146 = vmatpush1.msra.mxu0 0.0
    %147 = vmatprep.subr.mxu0 0.0
    %148 = vmatpush1.msra.mxu0 0.0
    %149 = vmatprep.subr.mxu0 0.0
    %150 = vmatpush1.msra.mxu0 0.0
    %151 = vmatprep.subr.mxu0 0.0
    %152 = vmatpush1.msra.mxu0 0.0
    %153 = vmatprep.subr.mxu0 0.0
    %154 = vmatpush1.msra.mxu0 0.0
    %155 = vmatprep.subr.mxu0 0.0
    %156 = vmatpush1.msra.mxu0 0.0
    %157 = vmatprep.subr.mxu0 0.0
    %158 = vmatpush1.msra.mxu0 0.0
    %159 = vmatprep.subr.mxu0 0.0
    %160 = vmatpush1.msra.mxu0 0.0
    %161 = vmatprep.subr.mxu0 0.0
    %162 = vmatpush1.msra.mxu0 0.0
    %163 = vmatprep.subr.mxu0 0.0
    %164 = vmatpush1.msra.mxu0 0.0
    %165 = vmatprep.subr.mxu0 0.0
    %166 = vmatpush1.msra.mxu0 0.0
    %167 = vmatprep.subr.mxu0 0.0
    %168 = vmatpush1.msra.mxu0 0.0
    %169 = vmatprep.subr.mxu0 0.0
    %170 = vmatpush1.msra.mxu0 0.0
    %171 = vmatprep.mubr.f32.mxu0 0.0
    %172 = vmatmul.mubr.f32.gmra.mrb[0].mxu0 %v83
    %v173 = vpop.f32.mrb[0].mxu0
    %v174 = vadd.f32 %v105, %v173
    %v175 = vpop.f32.mrb[0].mxu0
    %176 = vdwg.mxu0
    %v177 = vmax.f32 %v174, 0.0
    %v178 = vld [vmem:[#allocation8] sm:$0xff]
    %v179 = vld [vmem:[#allocation8 + $0x8] sm:$0xff]
    %v180 = vld [vmem:[#allocation8 + $0x10] sm:$0xff]
    %v181 = vld [vmem:[#allocation8 + $0x18] sm:$0xff]
    %v182 = vld [vmem:[#allocation8 + $0x20] sm:$0xff]
    %v183 = vld [vmem:[#allocation8 + $0x28] sm:$0xff]
    %v184 = vld [vmem:[#allocation8 + $0x30] sm:$0xff]
    %v185 = vld [vmem:[#allocation8 + $0x38] sm:$0xff]
    %v186 = vld [vmem:[#allocation8 + $0x40] sm:$0xff]
    %v187 = vld [vmem:[#allocation8 + $0x48] sm:$0xff]
    %v188 = vld [vmem:[#allocation8 + $0x50] sm:$0xff]
    %v189 = vld [vmem:[#allocation8 + $0x58] sm:$0xff]
    %v190 = vld [vmem:[#allocation8 + $0x60] sm:$0xff]
    %v191 = vld [vmem:[#allocation8 + $0x68] sm:$0xff]
    %v192 = vld [vmem:[#allocation8 + $0x70] sm:$0xff]
    %v193 = vld [vmem:[#allocation8 + $0x78] sm:$0xff]
    %v194 = vld [vmem:[#allocation10] sm:$0x1]
    %v196 = vlaneseq
    %v197 = vshrl.u32 %v196, 7
    %v198 = vsub.s32 0, %v197
    %v199 = vrot.slane %v194, %v198
    %201 = vmatprep.subr.mxu0 0.0
    %202 = vmatpush1.msra.mxu0 %v178
    %203 = vmatprep.subr.mxu0 0.0
    %204 = vmatpush1.msra.mxu0 %v179
    %205 = vmatprep.subr.mxu0 0.0
    %206 = vmatpush1.msra.mxu0 %v180
    %207 = vmatprep.subr.mxu0 0.0
    %208 = vmatpush1.msra.mxu0 %v181
    %209 = vmatprep.subr.mxu0 0.0
    %210 = vmatpush1.msra.mxu0 %v182
    %211 = vmatprep.subr.mxu0 0.0
    %212 = vmatpush1.msra.mxu0 %v183
    %213 = vmatprep.subr.mxu0 0.0
    %214 = vmatpush1.msra.mxu0 %v184
    %215 = vmatprep.subr.mxu0 0.0
    %216 = vmatpush1.msra.mxu0 %v185
    %217 = vmatprep.subr.mxu0 0.0
    %218 = vmatpush1.msra.mxu0 %v186
    %219 = vmatprep.subr.mxu0 0.0
    %220 = vmatpush1.msra.mxu0 %v187
    %221 = vmatprep.subr.mxu0 0.0
    %222 = vmatpush1.msra.mxu0 %v188
    %223 = vmatprep.subr.mxu0 0.0
    %224 = vmatpush1.msra.mxu0 %v189
    %225 = vmatprep.subr.mxu0 0.0
    %226 = vmatpush1.msra.mxu0 %v190
    %227 = vmatprep.subr.mxu0 0.0
    %228 = vmatpush1.msra.mxu0 %v191
    %229 = vmatprep.subr.mxu0 0.0
    %230 = vmatpush1.msra.mxu0 %v192
    %231 = vmatprep.subr.mxu0 0.0
    %232 = vmatpush1.msra.mxu0 %v193
    %233 = vmatprep.subr.mxu0 0.0
    %234 = vmatpush1.msra.mxu0 0.0
    %235 = vmatprep.subr.mxu0 0.0
    %236 = vmatpush1.msra.mxu0 0.0
    %237 = vmatprep.subr.mxu0 0.0
    %238 = vmatpush1.msra.mxu0 0.0
    %239 = vmatprep.subr.mxu0 0.0
    %240 = vmatpush1.msra.mxu0 0.0
    %241 = vmatprep.subr.mxu0 0.0
    %242 = vmatpush1.msra.mxu0 0.0
    %243 = vmatprep.subr.mxu0 0.0
    %244 = vmatpush1.msra.mxu0 0.0
    %245 = vmatprep.subr.mxu0 0.0
    %246 = vmatpush1.msra.mxu0 0.0
    %247 = vmatprep.subr.mxu0 0.0
    %248 = vmatpush1.msra.mxu0 0.0
    %249 = vmatprep.subr.mxu0 0.0
    %250 = vmatpush1.msra.mxu0 0.0
    %251 = vmatprep.subr.mxu0 0.0
    %252 = vmatpush1.msra.mxu0 0.0
    %253 = vmatprep.subr.mxu0 0.0
    %254 = vmatpush1.msra.mxu0 0.0
    %255 = vmatprep.subr.mxu0 0.0
    %256 = vmatpush1.msra.mxu0 0.0
    %257 = vmatprep.subr.mxu0 0.0
    %258 = vmatpush1.msra.mxu0 0.0
    %259 = vmatprep.subr.mxu0 0.0
    %260 = vmatpush1.msra.mxu0 0.0
    %261 = vmatprep.subr.mxu0 0.0
    %262 = vmatpush1.msra.mxu0 0.0
    %263 = vmatprep.subr.mxu0 0.0
    %264 = vmatpush1.msra.mxu0 0.0
    %265 = vmatprep.mubr.f32.mxu0 0.0
    %266 = vmatmul.mubr.f32.gmra.mrb[0].mxu0 %v177
    %v267 = vpop.f32.mrb[0].mxu0
    %v268 = vadd.f32 %v199, %v267
    %v269 = vpop.f32.mrb[0].mxu0
    %270 = vdwg.mxu0
    %271 = vst [vmem:[#allocation11] sm:$0xff] %v268
    // Predicated region
    $region42: #{tpu_custom_call.1} parent=1 // pred_check
      _
    $region43: #{tpu_custom_call.1} parent=1 // pred_check_branch
      %273 = sbr.rel (0) target = $region45
    $region44: #{tpu_custom_call.1} parent=1 // pred_region
      %s275 = ssub.s32 128, 128
      %276 = vsyncadd [#allocation4], %s275
      %s278 = sshll.u32 [#allocation11], 4
      %s279 = int_to_ptr.vmem [resolvable:$true] %s278
      %281 = dma.vmem_to_hbm [thread:$0]  %s279, 128, %s5, [#allocation4]
    $region45: #{tpu_custom_call.1} parent=1 // pred_fallthru
      _
    // Predicated region
    $region46: #{tpu_custom_call.1} parent=1 // pred_check
      _
    $region47: #{tpu_custom_call.1} parent=1 // pred_check_branch
      %283 = sbr.rel (0) target = $region49
    $region48: #{tpu_custom_call.1} parent=1 // pred_region
      %284 = dma.done [#allocation4], 128
    $region49: #{tpu_custom_call.1} parent=1 // pred_fallthru
      _
    %285 = vsyncpa [#allocation3], 1
    %286 = vsyncpa [#allocation6], 1
    %287 = vsyncpa [#allocation9], 1
    %288 = vsyncpa [#allocation4], 1

// kernel: tpu_custom_call.1
$region0: #{tpu_custom_call.1}
  #allocation0 [shape = 'u32[]', space=smem, size = 0x4, offset = 0x4, fixed_abs, tag = 'smem constant byte address 0x4 - core index']
  #allocation1 [shape = 'u32[144,128]{1,0:T(1,128)}', space=vmem, size = 0x12000, scoped, tag = 'internal scratch']
  %s0 = inlined_call_operand.hbm [shape: f32[8,128], index: 0, kind: input, shape index: {}]
  %s1 = inlined_call_operand.hbm [shape: f32[128,128], index: 1, kind: input, shape index: {}]
  %s2 = inlined_call_operand.hbm [shape: f32[1,128], index: 2, kind: input, shape index: {}]
  %s3 = inlined_call_operand.hbm [shape: f32[128,128], index: 3, kind: input, shape index: {}]
  %s4 = inlined_call_operand.hbm [shape: f32[1,128], index: 4, kind: input, shape index: {}]
  %s5 = inlined_call_operand.hbm [shape: f32[8,128], index: 5, kind: output, shape index: {}]
  %s6 = sld [smem:[#allocation0]]
  $region50: #{tpu_custom_call.1} parent=0
    _
  %s8 = ssub.s32 1, %s6
  %s9 = scalar_select 0, %s8, %s6
  $region1: #{tpu_custom_call.1} parent=0
    #allocation2 [shape = 'u8[4096]{0}', space=vmem, size = 0x1000, scoped, tag = 'input window, operand 0, single buffered']
    #allocation3 [shape = 's32[1]{0}', space=sflag, size = 0x4, scoped, tag = 'scoped memory for tpu_custom_call.1']
    #allocation4 [shape = 's32[1]{0}', space=sflag, size = 0x4, scoped, tag = 'scoped memory for tpu_custom_call.1']
    #allocation5 [shape = 'u8[65536]{0}', space=vmem, size = 0x10000, scoped, tag = 'input window, operand 1, single buffered']
    #allocation6 [shape = 's32[1]{0}', space=sflag, size = 0x4, scoped, tag = 'scoped memory for tpu_custom_call.1']
    #allocation7 [shape = 'u8[512]{0}', space=vmem, size = 0x400, scoped, tag = 'input window, operand 2, single buffered']
    #allocation8 [shape = 'u8[65536]{0}', space=vmem, size = 0x10000, scoped, tag = 'input window, operand 3, single buffered']
    #allocation9 [shape = 's32[1]{0}', space=sflag, size = 0x4, scoped, tag = 'scoped memory for tpu_custom_call.1']
    #allocation10 [shape = 'u8[512]{0}', space=vmem, size = 0x400, scoped, tag = 'input window, operand 4, single buffered']
    #allocation11 [shape = 'u8[4096]{0}', space=vmem, size = 0x1000, scoped, tag = 'output window, operand 0, single buffered']
    %10 = vsyncpa [#allocation3], 0
    %11 = vsyncpa [#allocation6], 0
    %12 = vsyncpa [#allocation9], 0
    %13 = vsyncpa [#allocation4], 0
    // Predicated region
    $region2: #{tpu_custom_call.1} parent=1 // pred_check
      _
    $region3: #{tpu_custom_call.1} parent=1 // pred_check_branch
      %15 = sbr.rel (0) target = $region5
    $region4: #{tpu_custom_call.1} parent=1 // pred_region
      %s17 = ssub.s32 128, 128
      %18 = vsyncadd [#allocation3], %s17
      %s20 = sshll.u32 [#allocation2], 4
      %s21 = int_to_ptr.vmem [resolvable:$true] %s20
      %23 = dma.hbm_to_vmem [thread:$0]  %s0, 128, %s21, [#allocation3]
    $region5: #{tpu_custom_call.1} parent=1 // pred_fallthru
      _
    // Predicated region
    $region6: #{tpu_custom_call.1} parent=1 // pred_check
      _
    $region7: #{tpu_custom_call.1} parent=1 // pred_check_branch
      %25 = sbr.rel (0) target = $region9
    $region8: #{tpu_custom_call.1} parent=1 // pred_region
      %s27 = ssub.s32 2048, 2048
      %28 = vsyncadd [#allocation6], %s27
      %s29 = sshll.u32 [#allocation5], 4
      %s30 = int_to_ptr.vmem [resolvable:$true] %s29
      %35 = dma.hbm_to_vmem [thread:$0]  %s1, 2048, %s30, [#allocation6], 128, 128, 8
    $region9: #{tpu_custom_call.1} parent=1 // pred_fallthru
      _
    // Predicated region
    $region10: #{tpu_custom_call.1} parent=1 // pred_check
      _
    $region11: #{tpu_custom_call.1} parent=1 // pred_check_branch
      %37 = sbr.rel (0) target = $region13
    $region12: #{tpu_custom_call.1} parent=1 // pred_region
      %s39 = ssub.s32 16, 16
      %40 = vsyncadd [#allocation6], %s39
      %s42 = sshll.u32 [#allocation7], 4
      %s43 = int_to_ptr.vmem [resolvable:$true] %s42
      %45 = dma.hbm_to_vmem [thread:$0]  %s2, 16, %s43, [#allocation6]
    $region13: #{tpu_custom_call.1} parent=1 // pred_fallthru
      _
    // Predicated region
    $region14: #{tpu_custom_call.1} parent=1 // pred_check
      _
    $region15: #{tpu_custom_call.1} parent=1 // pred_check_branch
      %47 = sbr.rel (0) target = $region17
    $region16: #{tpu_custom_call.1} parent=1 // pred_region
      %s49 = ssub.s32 2048, 2048
      %50 = vsyncadd [#allocation9], %s49
      %s51 = sshll.u32 [#allocation8], 4
      %s52 = int_to_ptr.vmem [resolvable:$true] %s51
      %57 = dma.hbm_to_vmem [thread:$0]  %s3, 2048, %s52, [#allocation9], 128, 128, 8
    $region17: #{tpu_custom_call.1} parent=1 // pred_fallthru
      _
    // Predicated region
    $region18: #{tpu_custom_call.1} parent=1 // pred_check
      _
    $region19: #{tpu_custom_call.1} parent=1 // pred_check_branch
      %59 = sbr.rel (0) target = $region21
    $region20: #{tpu_custom_call.1} parent=1 // pred_region
      %s61 = ssub.s32 16, 16
      %62 = vsyncadd [#allocation9], %s61
      %s64 = sshll.u32 [#allocation10], 4
      %s65 = int_to_ptr.vmem [resolvable:$true] %s64
      %67 = dma.hbm_to_vmem [thread:$0]  %s4, 16, %s65, [#allocation9]
    $region21: #{tpu_custom_call.1} parent=1 // pred_fallthru
      _
    // Predicated region
    $region22: #{tpu_custom_call.1} parent=1 // pred_check
      _
    $region23: #{tpu_custom_call.1} parent=1 // pred_check_branch
      %69 = sbr.rel (0) target = $region25
    $region24: #{tpu_custom_call.1} parent=1 // pred_region
      %70 = dma.done [#allocation3], 128
    $region25: #{tpu_custom_call.1} parent=1 // pred_fallthru
      _
    // Predicated region
    $region26: #{tpu_custom_call.1} parent=1 // pred_check
      _
    $region27: #{tpu_custom_call.1} parent=1 // pred_check_branch
      %72 = sbr.rel (0) target = $region29
    $region28: #{tpu_custom_call.1} parent=1 // pred_region
      %73 = dma.done [#allocation6], 2048
    $region29: #{tpu_custom_call.1} parent=1 // pred_fallthru
      _
    // Predicated region
    $region30: #{tpu_custom_call.1} parent=1 // pred_check
      _
    $region31: #{tpu_custom_call.1} parent=1 // pred_check_branch
      %75 = sbr.rel (0) target = $region33
    $region32: #{tpu_custom_call.1} parent=1 // pred_region
      %76 = dma.done [#allocation6], 16
    $region33: #{tpu_custom_call.1} parent=1 // pred_fallthru
      _
    // Predicated region
    $region34: #{tpu_custom_call.1} parent=1 // pred_check
      _
    $region35: #{tpu_custom_call.1} parent=1 // pred_check_branch
      %78 = sbr.rel (0) target = $region37
    $region36: #{tpu_custom_call.1} parent=1 // pred_region
      %79 = dma.done [#allocation9], 2048
    $region37: #{tpu_custom_call.1} parent=1 // pred_fallthru
      _
    // Predicated region
    $region38: #{tpu_custom_call.1} parent=1 // pred_check
      _
    $region39: #{tpu_custom_call.1} parent=1 // pred_check_branch
      %81 = sbr.rel (0) target = $region41
    $region40: #{tpu_custom_call.1} parent=1 // pred_region
      %82 = dma.done [#allocation9], 16
    $region41: #{tpu_custom_call.1} parent=1 // pred_fallthru
      _
    %v83 = vld [vmem:[#allocation2] sm:$0xff]
    %v84 = vld [vmem:[#allocation5] sm:$0xff]
    %v85 = vld [vmem:[#allocation5 + $0x8] sm:$0xff]
    %v86 = vld [vmem:[#allocation5 + $0x10] sm:$0xff]
    %v87 = vld [vmem:[#allocation5 + $0x18] sm:$0xff]
    %v88 = vld [vmem:[#allocation5 + $0x20] sm:$0xff]
    %v89 = vld [vmem:[#allocation5 + $0x28] sm:$0xff]
    %v90 = vld [vmem:[#allocation5 + $0x30] sm:$0xff]
    %v91 = vld [vmem:[#allocation5 + $0x38] sm:$0xff]
    %v92 = vld [vmem:[#allocation5 + $0x40] sm:$0xff]
    %v93 = vld [vmem:[#allocation5 + $0x48] sm:$0xff]
    %v94 = vld [vmem:[#allocation5 + $0x50] sm:$0xff]
    %v95 = vld [vmem:[#allocation5 + $0x58] sm:$0xff]
    %v96 = vld [vmem:[#allocation5 + $0x60] sm:$0xff]
    %v97 = vld [vmem:[#allocation5 + $0x68] sm:$0xff]
    %v98 = vld [vmem:[#allocation5 + $0x70] sm:$0xff]
    %v99 = vld [vmem:[#allocation5 + $0x78] sm:$0xff]
    %v100 = vld [vmem:[#allocation7] sm:$0x1]
    %v102 = vlaneseq
    %v103 = vshrl.u32 %v102, 7
    %v104 = vsub.s32 0, %v103
    %v105 = vrot.slane %v100, %v104
    %107 = vmatprep.subr.mxu0 0.0
    %108 = vmatpush1.msra.mxu0 %v84
    %109 = vmatprep.subr.mxu0 0.0
    %110 = vmatpush1.msra.mxu0 %v85
    %111 = vmatprep.subr.mxu0 0.0
    %112 = vmatpush1.msra.mxu0 %v86
    %113 = vmatprep.subr.mxu0 0.0
    %114 = vmatpush1.msra.mxu0 %v87
    %115 = vmatprep.subr.mxu0 0.0
    %116 = vmatpush1.msra.mxu0 %v88
    %117 = vmatprep.subr.mxu0 0.0
    %118 = vmatpush1.msra.mxu0 %v89
    %119 = vmatprep.subr.mxu0 0.0
    %120 = vmatpush1.msra.mxu0 %v90
    %121 = vmatprep.subr.mxu0 0.0
    %122 = vmatpush1.msra.mxu0 %v91
    %123 = vmatprep.subr.mxu0 0.0
    %124 = vmatpush1.msra.mxu0 %v92
    %125 = vmatprep.subr.mxu0 0.0
    %126 = vmatpush1.msra.mxu0 %v93
    %127 = vmatprep.subr.mxu0 0.0
    %128 = vmatpush1.msra.mxu0 %v94
    %129 = vmatprep.subr.mxu0 0.0
    %130 = vmatpush1.msra.mxu0 %v95
    %131 = vmatprep.subr.mxu0 0.0
    %132 = vmatpush1.msra.mxu0 %v96
    %133 = vmatprep.subr.mxu0 0.0
    %134 = vmatpush1.msra.mxu0 %v97
    %135 = vmatprep.subr.mxu0 0.0
    %136 = vmatpush1.msra.mxu0 %v98
    %137 = vmatprep.subr.mxu0 0.0
    %138 = vmatpush1.msra.mxu0 %v99
    %139 = vmatprep.subr.mxu0 0.0
    %140 = vmatpush1.msra.mxu0 0.0
    %141 = vmatprep.subr.mxu0 0.0
    %142 = vmatpush1.msra.mxu0 0.0
    %143 = vmatprep.subr.mxu0 0.0
    %144 = vmatpush1.msra.mxu0 0.0
    %145 = vmatprep.subr.mxu0 0.0
    %146 = vmatpush1.msra.mxu0 0.0
    %147 = vmatprep.subr.mxu0 0.0
    %148 = vmatpush1.msra.mxu0 0.0
    %149 = vmatprep.subr.mxu0 0.0
    %150 = vmatpush1.msra.mxu0 0.0
    %151 = vmatprep.subr.mxu0 0.0
    %152 = vmatpush1.msra.mxu0 0.0
    %153 = vmatprep.subr.mxu0 0.0
    %154 = vmatpush1.msra.mxu0 0.0
    %155 = vmatprep.subr.mxu0 0.0
    %156 = vmatpush1.msra.mxu0 0.0
    %157 = vmatprep.subr.mxu0 0.0
    %158 = vmatpush1.msra.mxu0 0.0
    %159 = vmatprep.subr.mxu0 0.0
    %160 = vmatpush1.msra.mxu0 0.0
    %161 = vmatprep.subr.mxu0 0.0
    %162 = vmatpush1.msra.mxu0 0.0
    %163 = vmatprep.subr.mxu0 0.0
    %164 = vmatpush1.msra.mxu0 0.0
    %165 = vmatprep.subr.mxu0 0.0
    %166 = vmatpush1.msra.mxu0 0.0
    %167 = vmatprep.subr.mxu0 0.0
    %168 = vmatpush1.msra.mxu0 0.0
    %169 = vmatprep.subr.mxu0 0.0
    %170 = vmatpush1.msra.mxu0 0.0
    %171 = vmatprep.mubr.f32.mxu0 0.0
    %172 = vmatmul.mubr.f32.gmra.mrb[0].mxu0 %v83
    %v173 = vpop.f32.mrb[0].mxu0
    %v174 = vadd.f32 %v105, %v173
    %v175 = vpop.f32.mrb[0].mxu0
    %176 = vdwg.mxu0
    %v177 = vmax.f32 %v174, 0.0
    %v178 = vld [vmem:[#allocation8] sm:$0xff]
    %v179 = vld [vmem:[#allocation8 + $0x8] sm:$0xff]
    %v180 = vld [vmem:[#allocation8 + $0x10] sm:$0xff]
    %v181 = vld [vmem:[#allocation8 + $0x18] sm:$0xff]
    %v182 = vld [vmem:[#allocation8 + $0x20] sm:$0xff]
    %v183 = vld [vmem:[#allocation8 + $0x28] sm:$0xff]
    %v184 = vld [vmem:[#allocation8 + $0x30] sm:$0xff]
    %v185 = vld [vmem:[#allocation8 + $0x38] sm:$0xff]
    %v186 = vld [vmem:[#allocation8 + $0x40] sm:$0xff]
    %v187 = vld [vmem:[#allocation8 + $0x48] sm:$0xff]
    %v188 = vld [vmem:[#allocation8 + $0x50] sm:$0xff]
    %v189 = vld [vmem:[#allocation8 + $0x58] sm:$0xff]
    %v190 = vld [vmem:[#allocation8 + $0x60] sm:$0xff]
    %v191 = vld [vmem:[#allocation8 + $0x68] sm:$0xff]
    %v192 = vld [vmem:[#allocation8 + $0x70] sm:$0xff]
    %v193 = vld [vmem:[#allocation8 + $0x78] sm:$0xff]
    %v194 = vld [vmem:[#allocation10] sm:$0x1]
    %v196 = vlaneseq
    %v197 = vshrl.u32 %v196, 7
    %v198 = vsub.s32 0, %v197
    %v199 = vrot.slane %v194, %v198
    %201 = vmatprep.subr.mxu0 0.0
    %202 = vmatpush1.msra.mxu0 %v178
    %203 = vmatprep.subr.mxu0 0.0
    %204 = vmatpush1.msra.mxu0 %v179
    %205 = vmatprep.subr.mxu0 0.0
    %206 = vmatpush1.msra.mxu0 %v180
    %207 = vmatprep.subr.mxu0 0.0
    %208 = vmatpush1.msra.mxu0 %v181
    %209 = vmatprep.subr.mxu0 0.0
    %210 = vmatpush1.msra.mxu0 %v182
    %211 = vmatprep.subr.mxu0 0.0
    %212 = vmatpush1.msra.mxu0 %v183
    %213 = vmatprep.subr.mxu0 0.0
    %214 = vmatpush1.msra.mxu0 %v184
    %215 = vmatprep.subr.mxu0 0.0
    %216 = vmatpush1.msra.mxu0 %v185
    %217 = vmatprep.subr.mxu0 0.0
    %218 = vmatpush1.msra.mxu0 %v186
    %219 = vmatprep.subr.mxu0 0.0
    %220 = vmatpush1.msra.mxu0 %v187
    %221 = vmatprep.subr.mxu0 0.0
    %222 = vmatpush1.msra.mxu0 %v188
    %223 = vmatprep.subr.mxu0 0.0
    %224 = vmatpush1.msra.mxu0 %v189
    %225 = vmatprep.subr.mxu0 0.0
    %226 = vmatpush1.msra.mxu0 %v190
    %227 = vmatprep.subr.mxu0 0.0
    %228 = vmatpush1.msra.mxu0 %v191
    %229 = vmatprep.subr.mxu0 0.0
    %230 = vmatpush1.msra.mxu0 %v192
    %231 = vmatprep.subr.mxu0 0.0
    %232 = vmatpush1.msra.mxu0 %v193
    %233 = vmatprep.subr.mxu0 0.0
    %234 = vmatpush1.msra.mxu0 0.0
    %235 = vmatprep.subr.mxu0 0.0
    %236 = vmatpush1.msra.mxu0 0.0
    %237 = vmatprep.subr.mxu0 0.0
    %238 = vmatpush1.msra.mxu0 0.0
    %239 = vmatprep.subr.mxu0 0.0
    %240 = vmatpush1.msra.mxu0 0.0
    %241 = vmatprep.subr.mxu0 0.0
    %242 = vmatpush1.msra.mxu0 0.0
    %243 = vmatprep.subr.mxu0 0.0
    %244 = vmatpush1.msra.mxu0 0.0
    %245 = vmatprep.subr.mxu0 0.0
    %246 = vmatpush1.msra.mxu0 0.0
    %247 = vmatprep.subr.mxu0 0.0
    %248 = vmatpush1.msra.mxu0 0.0
    %249 = vmatprep.subr.mxu0 0.0
    %250 = vmatpush1.msra.mxu0 0.0
    %251 = vmatprep.subr.mxu0 0.0
    %252 = vmatpush1.msra.mxu0 0.0
    %253 = vmatprep.subr.mxu0 0.0
    %254 = vmatpush1.msra.mxu0 0.0
    %255 = vmatprep.subr.mxu0 0.0
    %256 = vmatpush1.msra.mxu0 0.0
    %257 = vmatprep.subr.mxu0 0.0
    %258 = vmatpush1.msra.mxu0 0.0
    %259 = vmatprep.subr.mxu0 0.0
    %260 = vmatpush1.msra.mxu0 0.0
    %261 = vmatprep.subr.mxu0 0.0
    %262 = vmatpush1.msra.mxu0 0.0
    %263 = vmatprep.subr.mxu0 0.0
    %264 = vmatpush1.msra.mxu0 0.0
    %265 = vmatprep.mubr.f32.mxu0 0.0
    %266 = vmatmul.mubr.f32.gmra.mrb[0].mxu0 %v177
    %v267 = vpop.f32.mrb[0].mxu0
    %v268 = vadd.f32 %v199, %v267
    %v269 = vpop.f32.mrb[0].mxu0
    %270 = vdwg.mxu0
    %271 = vst [vmem:[#allocation11] sm:$0xff] %v268
    // Predicated region
    $region42: #{tpu_custom_call.1} parent=1 // pred_check
      _
    $region43: #{tpu_custom_call.1} parent=1 // pred_check_branch
      %273 = sbr.rel (0) target = $region45
    $region44: #{tpu_custom_call.1} parent=1 // pred_region
      %s275 = ssub.s32 128, 128
      %276 = vsyncadd [#allocation4], %s275
      %s278 = sshll.u32 [#allocation11], 4
      %s279 = int_to_ptr.vmem [resolvable:$true] %s278
      %281 = dma.vmem_to_hbm [thread:$0]  %s279, 128, %s5, [#allocation4]
    $region45: #{tpu_custom_call.1} parent=1 // pred_fallthru
      _
    // Predicated region
    $region46: #{tpu_custom_call.1} parent=1 // pred_check
      _
    $region47: #{tpu_custom_call.1} parent=1 // pred_check_branch
      %283 = sbr.rel (0) target = $region49
    $region48: #{tpu_custom_call.1} parent=1 // pred_region
      %284 = dma.done [#allocation4], 128
    $region49: #{tpu_custom_call.1} parent=1 // pred_fallthru
      _
    %285 = vsyncpa [#allocation3], 1
    %286 = vsyncpa [#allocation6], 1
    %287 = vsyncpa [#allocation9], 1
    %288 = vsyncpa [#allocation4], 1

</llo_original>
